<compile_context>
chip_gen: v7x
topology: tpu7x:2x2x1
jax: 0.10.0
libtpu: 0.0.40
codegen_flags: <defaults>
</compile_context>

<pallas_src>
import jax
import jax.numpy as jnp
from jax.experimental import pallas as pl
from jax.experimental.pallas import tpu as pltpu

# ----------------------------- constants ------------------------------------
EMBED_DIM = 32            # embedding_dim / memory_dim
NUM_SURV_SAMPLES = 5      # args.num_surv_samples
H_MAX = 5.0               # args.h_max
TIMESTEP = 0.5            # args.timestep
NUM_SAMPLES = int(H_MAX / TIMESTEP) + 1
TRAIN_TD_MAX = 10.0       # train_td_max global used for td normalization
MAX_TM = 2048             # max rows (lane axis) per grid step


def _round_up(x, m):
    return ((x + m - 1) // m) * m


# ----------------------------- Pallas kernel --------------------------------
def _hawkes_kernel(scal_ref, data_ref, out_ref):
    """Fused Hawkes intensity for one lane-tile of rows.

    scal_ref: SMEM f32 (16,)
        [b0, b1, psi0, psi1, alpha0, alpha1,
         1/(psi0+1e-7), 1/(psi1+1e-7), -w_t0/td_max, -w_t1/td_max, ...pad]
    data_ref: VMEM (4, TM)
        row0 = P[u,0]+P[v,0], row1 = P[u,1]+P[v,1], row2 = td,
        row3 = selector (0 -> lam0, 1 -> lam1, 2 -> lam0+lam1)
    out_ref : VMEM (1, TM)   Lambda per row
    """
    d = data_ref[...]                               # (4, TM)

    b0 = scal_ref[0]
    b1 = scal_ref[1]
    psi0 = scal_ref[2]
    psi1 = scal_ref[3]
    alpha0 = scal_ref[4]
    alpha1 = scal_ref[5]
    inv_psi0 = scal_ref[6]
    inv_psi1 = scal_ref[7]
    nw0 = scal_ref[8]                               # -w_t0 / train_td_max
    nw1 = scal_ref[9]

    td = d[2:3, :]
    sel = d[3:4, :]

    # g_k / (psi_k + 1e-7); g_k = (P[u,k] + P[v,k]) + b_k
    gp0 = (d[0:1, :] + b0) * inv_psi0               # (1, TM)
    gp1 = (d[1:2, :] + b1) * inv_psi1

    # One EUP exp pass over a sublane-stacked (4, TM) input:
    #   rows 0,1: -|gp_k|   (softplus);  rows 2,3: -w_t_k * td / td_max (decay)
    exp_in = jnp.concatenate(
        [-jnp.abs(gp0), -jnp.abs(gp1), nw0 * td, nw1 * td], axis=0)   # (4, TM)
    e = jnp.exp(exp_in)

    # One EUP log pass: stable softplus(x) = max(x, 0) + log(1 + exp(-|x|))
    gp = jnp.concatenate([gp0, gp1], axis=0)                          # (2, TM)
    sp = jnp.maximum(gp, 0.0) + jnp.log(1.0 + e[0:2, :])              # (2, TM)

    lam0 = psi0 * sp[0:1, :] + alpha0 * e[2:3, :]
    lam1 = psi1 * sp[1:2, :] + alpha1 * e[3:4, :]

    out_ref[...] = jnp.where(sel > 1.5, lam0 + lam1,
                             jnp.where(sel > 0.5, lam1, lam0))


def fused_hawkes_pallas(data, scal):
    """data: (4, M) f32 [g0, g1, td, sel]; scal: (16,) f32 -> Lambda (M,) f32."""
    _, M = data.shape
    Mp128 = _round_up(max(M, 128), 128)
    TM = min(MAX_TM, Mp128)
    Mp = _round_up(Mp128, TM)
    pad = Mp - M
    data_p = jnp.pad(data, ((0, 0), (0, pad)))   # padded tail columns are 0 -> finite

    ce = pl.CostEstimate(
        flops=24 * Mp,
        transcendentals=6 * Mp,
        bytes_accessed=4 * (5 * Mp + 16),
    )

    out = pl.pallas_call(
        _hawkes_kernel,
        out_shape=jax.ShapeDtypeStruct((1, Mp), jnp.float32),
        grid_spec=pltpu.PrefetchScalarGridSpec(
            num_scalar_prefetch=0,
            grid=(Mp // TM,),
            in_specs=[
                pl.BlockSpec(memory_space=pltpu.MemorySpace.SMEM),  # scalar params
                pl.BlockSpec((4, TM), lambda i: (0, i)),            # data tile
            ],
            out_specs=pl.BlockSpec((1, TM), lambda i: (0, i)),      # lane-dense output
        ),
        compiler_params=pltpu.CompilerParams(
            dimension_semantics=("parallel",)),
        cost_estimate=ce,
    )(scal, data_p)
    return out[0, :M]


# ----------------------------- parameters -----------------------------------
def init_params(key, embed_dim=EMBED_DIM):
    k0, k1, k2, k3, k4, k5 = jax.random.split(key, 6)
    bound = 1.0 / jnp.sqrt(2.0 * embed_dim)
    w0 = jax.random.uniform(k0, (2 * embed_dim,), jnp.float32, -bound, bound)
    w1 = jax.random.uniform(k1, (2 * embed_dim,), jnp.float32, -bound, bound)
    b0 = jax.random.uniform(k2, (), jnp.float32, -bound, bound)
    b1 = jax.random.uniform(k3, (), jnp.float32, -bound, bound)
    psi = 0.5 * jnp.ones((2,), jnp.float32)
    alpha = jax.random.uniform(k4, (2,), jnp.float32)
    w_t = jax.random.uniform(k5, (2,), jnp.float32)
    return {
        "omega_w": jnp.stack([w0, w1], axis=0),   # (2, 2D)
        "omega_b": jnp.stack([b0, b1]),           # (2,)
        "psi": psi, "alpha": alpha, "w_t": w_t,
    }


def _pack_params(params):
    """Symmetrized projection weights + pre-folded scalar vector."""
    w = params["omega_w"].astype(jnp.float32)          # (2, 2D)
    D = w.shape[1] // 2
    # g_k = 0.5*(w_k[:D] + w_k[D:]) . (z_u + z_v) + b_k
    wsym = 0.5 * (w[:, :D] + w[:, D:])                 # (2, D)

    psi = params["psi"].astype(jnp.float32)
    vals = jnp.concatenate([
        params["omega_b"].astype(jnp.float32),         # b0, b1
        psi,                                           # psi0, psi1
        params["alpha"].astype(jnp.float32),           # alpha0, alpha1
        1.0 / (psi + 1e-7),                            # inv_psi0, inv_psi1
        -params["w_t"].astype(jnp.float32) / TRAIN_TD_MAX,  # nw0, nw1
    ])
    scal = jnp.zeros((16,), jnp.float32).at[:vals.shape[0]].set(vals)
    return wsym, scal


# ----------------------------- forward (glue + one kernel call) --------------
@jax.jit
def dyrep_decoder_forward(params, all_embeddings, assoc, src, pos_dst,
                          neg_dst_surv, neg_src_surv, neg_dst,
                          last_update, cur_time, et):
    S = NUM_SURV_SAMPLES
    B = src.shape[0]

    wsym, scal = _pack_params(params)

    # Tiny per-node projection table P[n, k] = wsym_k . all_embeddings[n]
    P = all_embeddings.astype(jnp.float32) @ wsym.T     # (num_nodes, 2)

    n_src = assoc[src]
    n_dst = assoc[pos_dst]
    n_negdst_surv = assoc[neg_dst_surv]
    n_negsrc_surv = assoc[neg_src_surv]
    n_negdst = assoc[neg_dst]

    lu_src = last_update[n_src]
    lu_dst = last_update[n_dst]

    td_pos = cur_time - jnp.maximum(lu_src, lu_dst)
    td_neg_dst = (jnp.repeat(cur_time, S)
                  - jnp.maximum(jnp.repeat(lu_src, S), last_update[n_negdst_surv]))
    td_neg_src = (jnp.repeat(cur_time, S)
                  - jnp.maximum(last_update[n_negsrc_surv], jnp.repeat(lu_dst, S)))
    td_neg = cur_time - jnp.maximum(lu_src, last_update[n_negdst])

    t_grid = jnp.linspace(0.0, H_MAX, NUM_SAMPLES, dtype=jnp.float32)
    all_td = jnp.repeat(t_grid, B)                      # (NUM_SAMPLES*B,)

    et_f = (et > 0).astype(jnp.float32)

    # Concatenated row batch:
    #   [lambda_uv | surv_u(lam0+lam1) | surv_v(lam0+lam1) | lambda_uv_neg | time grid]
    u_idx = jnp.concatenate([n_src, jnp.repeat(n_src, S), n_negsrc_surv,
                             n_src, jnp.tile(n_src, NUM_SAMPLES)])
    v_idx = jnp.concatenate([n_dst, n_negdst_surv, jnp.repeat(n_dst, S),
                             n_negdst, jnp.tile(n_dst, NUM_SAMPLES)])
    td_all = jnp.concatenate([td_pos, td_neg_dst, td_neg_src, td_neg, all_td]
                             ).astype(jnp.float32)
    # selector: 0 -> lam(et=0), 1 -> lam(et=1), 2 -> lam0 + lam1 (survival pairs)
    sel_all = jnp.concatenate([et_f,
                               jnp.full((2 * B * S,), 2.0, jnp.float32),
                               et_f,
                               jnp.tile(et_f, NUM_SAMPLES)])

    # Row gathers on the tiny (num_nodes, 2) table; the (2D, M) embedding slab
    # of the previous version is gone entirely.
    gsum = jnp.take(P, u_idx, axis=0) + jnp.take(P, v_idx, axis=0)   # (M, 2)
    data = jnp.concatenate(
        [gsum.T, td_all[None, :], sel_all[None, :]], axis=0)         # (4, M)

    # TODO(synk): for small B, scalar-prefetch u_idx/v_idx and keep the
    #   (num_nodes, 2) projection table resident in VMEM so the gather/concat
    #   glue also moves inside this single pallas_call.
    lam_all = fused_hawkes_pallas(data, scal)           # (M,)

    o0 = B
    o1 = o0 + B * S
    o2 = o1 + B * S
    o3 = o2 + B
    lambda_uv = lam_all[:o0]
    surv_u = lam_all[o0:o1]          # already lam(et=0)+lam(et=1)
    surv_v = lam_all[o1:o2]
    lambda_uv_neg = lam_all[o2:o3]
    lam_tp = lam_all[o3:].reshape(NUM_SAMPLES, B)

    s = surv_u.reshape(B, S).mean(axis=-1) + surv_v.reshape(B, S).mean(axis=-1)
    surv = jnp.exp(-s)
    cond_pos = lambda_uv * surv
    cond_neg = lambda_uv_neg * surv

    # return-time prediction; the reference's 0.5*(x + x) symmetric branch == x
    intensity = lam_tp
    integral = jnp.cumsum(TIMESTEP * intensity, axis=0)
    density = intensity * jnp.exp(-integral)
    t_sample = all_td.reshape(NUM_SAMPLES, B) * density
    return_time_pred = (TIMESTEP * 0.5 * (t_sample[:-1] + t_sample[1:])).sum(axis=0)

    return cond_pos, cond_neg, return_time_pred


# ----------------------------- demo -----------------------------------------
if __name__ == "__main__":
    key = jax.random.PRNGKey(0)
    kp, ke, ka, ks, kd, kns, knd, knss, klu, kct, ket = jax.random.split(key, 11)

    params = init_params(kp)

    num_nodes = 20
    B = 8
    S = NUM_SURV_SAMPLES

    all_embeddings = jax.random.normal(ke, (num_nodes, EMBED_DIM), jnp.float32)
    assoc = jax.random.permutation(ka, jnp.arange(num_nodes, dtype=jnp.int32))

    src = jax.random.randint(ks, (B,), 0, num_nodes, jnp.int32)
    pos_dst = jax.random.randint(kd, (B,), 0, num_nodes, jnp.int32)
    neg_dst = jax.random.randint(knd, (B,), 0, num_nodes, jnp.int32)
    neg_dst_surv = jax.random.randint(kns, (B * S,), 0, num_nodes, jnp.int32)
    neg_src_surv = jax.random.randint(knss, (B * S,), 0, num_nodes, jnp.int32)

    last_update = jax.random.uniform(klu, (num_nodes,), jnp.float32, 0.0, 5.0)
    cur_time = 5.0 + jax.random.uniform(kct, (B,), jnp.float32, 0.0, 5.0)
    et = jax.random.randint(ket, (B,), 0, 2, jnp.int32)

    cond_pos, cond_neg, return_time_pred = dyrep_decoder_forward(
        params, all_embeddings, assoc, src, pos_dst,
        neg_dst_surv, neg_src_surv, neg_dst, last_update, cur_time, et)

    jax.block_until_ready((cond_pos, cond_neg, return_time_pred))
    assert cond_pos.shape == (B,) and cond_neg.shape == (B,) and return_time_pred.shape == (B,)
    assert bool(jnp.all(jnp.isfinite(cond_pos)))
    assert bool(jnp.all(jnp.isfinite(cond_neg)))
    assert bool(jnp.all(jnp.isfinite(return_time_pred)))
    print("KERNEL_OK")
</pallas_src>

<mosaic_0001>
module attributes {stable_mosaic.version = 11 : i64} {
  func.func @_hawkes_kernel(%arg0: i32, %arg1: memref<16xf32, #tpu.memory_space<smem>>, %arg2: memref<4x256xf32, #tpu.memory_space<vmem>>, %arg3: memref<1x256xf32, #tpu.memory_space<vmem>>) attributes {dimension_semantics = [#tpu.dimension_semantics<parallel>], iteration_bounds = array<i64: 1>, scalar_prefetch = 0 : i64, scratch_operands = 0 : i64, tpu.core_type = #tpu.core_type<tc>, window_params = [{transform_indices = @transform_0, window_bounds = array<i64: 16>}, {transform_indices = @transform_1, window_bounds = array<i64: 4, 256>}, {transform_indices = @transform_2, window_bounds = array<i64: 1, 256>}]} {
    %c0 = arith.constant 0 : index
    %c0_0 = arith.constant 0 : index
    %0 = vector.load %arg2[%c0, %c0_0] : memref<4x256xf32, #tpu.memory_space<vmem>>, vector<4x256xf32>
    %c0_1 = arith.constant 0 : index
    %1 = memref.load %arg1[%c0_1] : memref<16xf32, #tpu.memory_space<smem>>
    %c1 = arith.constant 1 : index
    %2 = memref.load %arg1[%c1] : memref<16xf32, #tpu.memory_space<smem>>
    %c2 = arith.constant 2 : index
    %3 = memref.load %arg1[%c2] : memref<16xf32, #tpu.memory_space<smem>>
    %c3 = arith.constant 3 : index
    %4 = memref.load %arg1[%c3] : memref<16xf32, #tpu.memory_space<smem>>
    %c4 = arith.constant 4 : index
    %5 = memref.load %arg1[%c4] : memref<16xf32, #tpu.memory_space<smem>>
    %c5 = arith.constant 5 : index
    %6 = memref.load %arg1[%c5] : memref<16xf32, #tpu.memory_space<smem>>
    %c6 = arith.constant 6 : index
    %7 = memref.load %arg1[%c6] : memref<16xf32, #tpu.memory_space<smem>>
    %c7 = arith.constant 7 : index
    %8 = memref.load %arg1[%c7] : memref<16xf32, #tpu.memory_space<smem>>
    %c8 = arith.constant 8 : index
    %9 = memref.load %arg1[%c8] : memref<16xf32, #tpu.memory_space<smem>>
    %c9 = arith.constant 9 : index
    %10 = memref.load %arg1[%c9] : memref<16xf32, #tpu.memory_space<smem>>
    %11 = vector.extract_strided_slice %0 {offsets = [2, 0], sizes = [1, 256], strides = [1, 1]} : vector<4x256xf32> to vector<1x256xf32>
    %12 = vector.extract_strided_slice %0 {offsets = [3, 0], sizes = [1, 256], strides = [1, 1]} : vector<4x256xf32> to vector<1x256xf32>
    %13 = vector.extract_strided_slice %0 {offsets = [0, 0], sizes = [1, 256], strides = [1, 1]} : vector<4x256xf32> to vector<1x256xf32>
    %14 = vector.broadcast %1 : f32 to vector<1x256xf32>
    %15 = arith.addf %13, %14 : vector<1x256xf32>
    %16 = vector.broadcast %7 : f32 to vector<1x256xf32>
    %17 = arith.mulf %15, %16 : vector<1x256xf32>
    %18 = vector.extract_strided_slice %0 {offsets = [1, 0], sizes = [1, 256], strides = [1, 1]} : vector<4x256xf32> to vector<1x256xf32>
    %19 = vector.broadcast %2 : f32 to vector<1x256xf32>
    %20 = arith.addf %18, %19 : vector<1x256xf32>
    %21 = vector.broadcast %8 : f32 to vector<1x256xf32>
    %22 = arith.mulf %20, %21 : vector<1x256xf32>
    %23 = math.absf %17 : vector<1x256xf32>
    %cst = arith.constant 0.000000e+00 : f32
    %24 = vector.broadcast %cst : f32 to vector<1x256xf32>
    %25 = arith.subf %24, %23 : vector<1x256xf32>
    %26 = math.absf %22 : vector<1x256xf32>
    %cst_2 = arith.constant 0.000000e+00 : f32
    %27 = vector.broadcast %cst_2 : f32 to vector<1x256xf32>
    %28 = arith.subf %27, %26 : vector<1x256xf32>
    %29 = vector.broadcast %9 : f32 to vector<1x256xf32>
    %30 = arith.mulf %29, %11 : vector<1x256xf32>
    %31 = vector.broadcast %10 : f32 to vector<1x256xf32>
    %32 = arith.mulf %31, %11 : vector<1x256xf32>
    %33 = tpu.concatenate %25, %28, %30, %32 in 0 : vector<1x256xf32>, vector<1x256xf32>, vector<1x256xf32>, vector<1x256xf32> -> vector<4x256xf32>
    %34 = math.exp %33 : vector<4x256xf32>
    %35 = tpu.concatenate %17, %22 in 0 : vector<1x256xf32>, vector<1x256xf32> -> vector<2x256xf32>
    %cst_3 = arith.constant 0.000000e+00 : f32
    %36 = vector.broadcast %cst_3 : f32 to vector<2x256xf32>
    %37 = arith.maximumf %35, %36 : vector<2x256xf32>
    %38 = vector.extract_strided_slice %34 {offsets = [0, 0], sizes = [2, 256], strides = [1, 1]} : vector<4x256xf32> to vector<2x256xf32>
    %cst_4 = arith.constant 1.000000e+00 : f32
    %39 = vector.broadcast %cst_4 : f32 to vector<2x256xf32>
    %40 = arith.addf %39, %38 : vector<2x256xf32>
    %41 = math.log %40 : vector<2x256xf32>
    %42 = arith.addf %37, %41 : vector<2x256xf32>
    %43 = vector.extract_strided_slice %42 {offsets = [0, 0], sizes = [1, 256], strides = [1, 1]} : vector<2x256xf32> to vector<1x256xf32>
    %44 = vector.broadcast %3 : f32 to vector<1x256xf32>
    %45 = arith.mulf %44, %43 : vector<1x256xf32>
    %46 = vector.extract_strided_slice %34 {offsets = [2, 0], sizes = [1, 256], strides = [1, 1]} : vector<4x256xf32> to vector<1x256xf32>
    %47 = vector.broadcast %5 : f32 to vector<1x256xf32>
    %48 = arith.mulf %47, %46 : vector<1x256xf32>
    %49 = arith.addf %45, %48 : vector<1x256xf32>
    %50 = vector.extract_strided_slice %42 {offsets = [1, 0], sizes = [1, 256], strides = [1, 1]} : vector<2x256xf32> to vector<1x256xf32>
    %51 = vector.broadcast %4 : f32 to vector<1x256xf32>
    %52 = arith.mulf %51, %50 : vector<1x256xf32>
    %53 = vector.extract_strided_slice %34 {offsets = [3, 0], sizes = [1, 256], strides = [1, 1]} : vector<4x256xf32> to vector<1x256xf32>
    %54 = vector.broadcast %6 : f32 to vector<1x256xf32>
    %55 = arith.mulf %54, %53 : vector<1x256xf32>
    %56 = arith.addf %52, %55 : vector<1x256xf32>
    %cst_5 = arith.constant 1.500000e+00 : f32
    %57 = vector.broadcast %cst_5 : f32 to vector<1x256xf32>
    %58 = arith.cmpf ogt, %12, %57 : vector<1x256xf32>
    %59 = arith.addf %49, %56 : vector<1x256xf32>
    %cst_6 = arith.constant 5.000000e-01 : f32
    %60 = vector.broadcast %cst_6 : f32 to vector<1x256xf32>
    %61 = arith.cmpf ogt, %12, %60 : vector<1x256xf32>
    %62 = arith.select %61, %56, %49 : vector<1x256xi1>, vector<1x256xf32>
    %63 = arith.select %58, %59, %62 : vector<1x256xi1>, vector<1x256xf32>
    %c0_7 = arith.constant 0 : index
    %c0_8 = arith.constant 0 : index
    %64 = vector.load %arg3[%c0_7, %c0_8] : memref<1x256xf32, #tpu.memory_space<vmem>>, vector<1x256xf32>
    tpu.vector_store %arg3[%c0_7, %c0_8], %63 {strides = array<i32>} : memref<1x256xf32, #tpu.memory_space<vmem>>, vector<1x256xf32>,
    return
  }
  func.func @transform_0(%arg0: i32) -> i32 {
    %c0_i32 = arith.constant 0 : i32
    %c0_i32_0 = arith.constant 0 : i32
    return %c0_i32 : i32
  }
  func.func @transform_1(%arg0: i32) -> (i32, i32) {
    %c0_i32 = arith.constant 0 : i32
    %c0_i32_0 = arith.constant 0 : i32
    return %c0_i32, %arg0 : i32, i32
  }
  func.func @transform_2(%arg0: i32) -> (i32, i32) {
    %c0_i32 = arith.constant 0 : i32
    %c0_i32_0 = arith.constant 0 : i32
    return %c0_i32, %arg0 : i32, i32
  }
}

</mosaic_0001>

<llo_original>
// kernel: tile.23
$region0: #{tile.23}
  #allocation0 [shape = 's32[1]{0}', space=sflag, size = 0x4, scoped, tag = 'scoped memory for tile.23']
  %s0 = inlined_call_operand.vmem [shape: s32[8], index: 0, kind: input, shape index: {}]
  %s1 = inlined_call_operand.vmem [shape: s32[11,8], index: 1, kind: output, shape index: {}]
  // Predicated region
  $region2: #{tile.23} parent=0 // pred_check
    _
  $region3: #{tile.23} parent=0 // pred_check_branch
    %3 = sbr.rel (0) target = $region5
  $region4: #{tile.23} parent=0 // pred_region
    _
  $region5: #{tile.23} parent=0 // pred_fallthru
    _
  %v4 = vld [vmem:[%s0] ss:$0 sm:$0xff]
  %5 = vst [vmem:[%s1] sm:$0xff] %v4
  %s6 = scalar_lea.vmem %s1, 8
  %7 = vst [vmem:[%s6] sm:$0xff] %v4

// kernel: tile.24
$region0: #{tile.24}
  %s0 = inlined_call_operand.vmem [shape: s32[11,8], index: 0, kind: input, shape index: {}]
  %s1 = inlined_call_operand.vmem [shape: s32[88], index: 1, kind: output, shape index: {}]
  $region1: #{tile.24} parent=0
    #allocation0 [shape = 'u8[4096]{0}', space=vmem, size = 0x1000, scoped, tag = 'scoped mem for output reshape']
    %v2 = vld [vmem:[%s0] sm:$0x1]
    %vm3 = vcmask 64512
    %4 = vst.msk [vmem:[#allocation0] sm:$0x1] %vm3, %v2
    %s5 = scalar_lea.vmem %s0, 10
    %v6 = vld [vmem:[%s5] sm:$0x1]
    %7 = vrot.lane.b32.xlu0 %v6, 80
    %v8 = vpop.permute.xlu0 %7
    %vm9 = vcmask 720512
    %10 = vst.msk [vmem:[#allocation0] sm:$0x1] %vm9, %v8
    %s11 = scalar_lea.vmem %s0, 9
    %v12 = vld [vmem:[%s11] sm:$0x1]
    %13 = vrot.lane.b32.xlu0 %v12, 72
    %v14 = vpop.permute.xlu0 %13
    %vm15 = vcmask 654912
    %16 = vst.msk [vmem:[#allocation0] sm:$0x1] %vm15, %v14
    %s17 = scalar_lea.vmem %s0, 8
    %v18 = vld [vmem:[%s17] sm:$0x1]
    %19 = vrot.lane.b32.xlu0 %v18, 64
    %v20 = vpop.permute.xlu0 %19
    %vm21 = vcmask 589312
    %22 = vst.msk [vmem:[#allocation0] sm:$0x1] %vm21, %v20
    %s23 = scalar_lea.vmem %s0, 7
    %v24 = vld [vmem:[%s23] sm:$0x1]
    %25 = vrot.lane.b32.xlu0 %v24, 56
    %v26 = vpop.permute.xlu0 %25
    %vm27 = vcmask 523712
    %28 = vst.msk [vmem:[#allocation0] sm:$0x1] %vm27, %v26
    %s29 = scalar_lea.vmem %s0, 6
    %v30 = vld [vmem:[%s29] sm:$0x1]
    %31 = vrot.lane.b32.xlu0 %v30, 48
    %v32 = vpop.permute.xlu0 %31
    %vm33 = vcmask 458112
    %34 = vst.msk [vmem:[#allocation0] sm:$0x1] %vm33, %v32
    %s35 = scalar_lea.vmem %s0, 5
    %v36 = vld [vmem:[%s35] sm:$0x1]
    %37 = vrot.lane.b32.xlu0 %v36, 40
    %v38 = vpop.permute.xlu0 %37
    %vm39 = vcmask 392512
    %40 = vst.msk [vmem:[#allocation0] sm:$0x1] %vm39, %v38
    %s41 = scalar_lea.vmem %s0, 4
    %v42 = vld [vmem:[%s41] sm:$0x1]
    %43 = vrot.lane.b32.xlu0 %v42, 32
    %v44 = vpop.permute.xlu0 %43
    %vm45 = vcmask 326912
    %46 = vst.msk [vmem:[#allocation0] sm:$0x1] %vm45, %v44
    %s47 = scalar_lea.vmem %s0, 3
    %v48 = vld [vmem:[%s47] sm:$0x1]
    %49 = vrot.lane.b32.xlu0 %v48, 24
    %v50 = vpop.permute.xlu0 %49
    %vm51 = vcmask 261312
    %52 = vst.msk [vmem:[#allocation0] sm:$0x1] %vm51, %v50
    %s53 = scalar_lea.vmem %s0, 2
    %v54 = vld [vmem:[%s53] sm:$0x1]
    %55 = vrot.lane.b32.xlu0 %v54, 16
    %v56 = vpop.permute.xlu0 %55
    %vm57 = vcmask 195712
    %58 = vst.msk [vmem:[#allocation0] sm:$0x1] %vm57, %v56
    %s59 = scalar_lea.vmem %s0, 1
    %v60 = vld [vmem:[%s59] sm:$0x1]
    %61 = vrot.lane.b32.xlu0 %v60, 8
    %v62 = vpop.permute.xlu0 %61
    %vm63 = vcmask 130112
    %64 = vst.msk [vmem:[#allocation0] sm:$0x1] %vm63, %v62
    %s66 = sshllo.u32 0, 1
    %v68 = vld [vmem:[#allocation0] sm:%s66]
    %s69 = sshllo.u32 0, 1
    %70 = vst [vmem:[%s1] sm:%s69] %v68

// kernel: tile.28
$region0: #{tile.28}
  #allocation0 [shape = 's32[1]{0}', space=sflag, size = 0x4, scoped, tag = 'scoped memory for tile.28']
  %s0 = inlined_call_operand.vmem [shape: f32[8], index: 0, kind: input, shape index: {}]
  %s1 = inlined_call_operand.vmem [shape: f32[11,8], index: 1, kind: output, shape index: {}]
  // Predicated region
  $region2: #{tile.28} parent=0 // pred_check
    _
  $region3: #{tile.28} parent=0 // pred_check_branch
    %3 = sbr.rel (0) target = $region5
  $region4: #{tile.28} parent=0 // pred_region
    _
  $region5: #{tile.28} parent=0 // pred_fallthru
    _
  %v4 = vld [vmem:[%s0] ss:$0 sm:$0xff]
  %5 = vst [vmem:[%s1] sm:$0xff] %v4
  %s6 = scalar_lea.vmem %s1, 8
  %7 = vst [vmem:[%s6] sm:$0xff] %v4

// kernel: dyrep_decoder_forward.1
$region0: #{dyrep_decoder_forward.1}
  #allocation0 [shape = 'u32[]', space=smem, size = 0x4, offset = 0x4, fixed_abs, tag = 'smem constant byte address 0x4 - core index']
  #allocation1 [shape = 'u32[144,128]{1,0:T(1,128)}', space=vmem, size = 0x12000, scoped, tag = 'internal scratch']
  %s0 = inlined_call_operand.vmem [shape: f32[16], index: 0, kind: input, shape index: {}]
  %s1 = inlined_call_operand.vmem [shape: f32[4,256], index: 1, kind: input, shape index: {}]
  %s2 = inlined_call_operand.vmem [shape: f32[1,256], index: 2, kind: output, shape index: {}]
  %s3 = sld [smem:[#allocation0]]
  $region22: #{dyrep_decoder_forward.1} parent=0
    _
  %s5 = ssub.s32 1, %s3
  %s6 = scalar_select 0, %s5, %s3
  $region1: #{dyrep_decoder_forward.1} parent=0
    #allocation2 [shape = 'u8[512]{0}', space=smem, size = 0x200, scoped, tag = 'input window, operand 0, single buffered']
    #allocation3 [shape = 's32[1]{0}', space=sflag, size = 0x4, scoped, tag = 'scoped memory for dyrep_decoder_forward.1']
    %7 = vsyncpa [#allocation3], 0
    // Predicated region
    $region2: #{dyrep_decoder_forward.1} parent=1 // pred_check
      _
    $region3: #{dyrep_decoder_forward.1} parent=1 // pred_check_branch
      %9 = sbr.rel (0) target = $region5
    $region4: #{dyrep_decoder_forward.1} parent=1 // pred_region
      %s11 = ssub.s32 16, 16
      %12 = vsyncadd [#allocation3], %s11
      %s14 = sshll.u32 %s0, 4
      %s15 = int_to_ptr.vmem [resolvable:$true] %s14
      %17 = dma.vmem_to_smem %s15, 16, [#allocation2], [#allocation3]
    $region5: #{dyrep_decoder_forward.1} parent=1 // pred_fallthru
      _
    // Predicated region
    $region6: #{dyrep_decoder_forward.1} parent=1 // pred_check
      _
    $region7: #{dyrep_decoder_forward.1} parent=1 // pred_check_branch
      %19 = sbr.rel (0) target = $region9
    $region8: #{dyrep_decoder_forward.1} parent=1 // pred_region
      _
    $region9: #{dyrep_decoder_forward.1} parent=1 // pred_fallthru
      _
    // Predicated region
    $region10: #{dyrep_decoder_forward.1} parent=1 // pred_check
      _
    $region11: #{dyrep_decoder_forward.1} parent=1 // pred_check_branch
      %21 = sbr.rel (0) target = $region13
    $region12: #{dyrep_decoder_forward.1} parent=1 // pred_region
      %22 = dma.done [#allocation3], 16
    $region13: #{dyrep_decoder_forward.1} parent=1 // pred_fallthru
      _
    %23 = sfence
    %v24 = vld [vmem:[%s1] sm:$0xff]
    %s25 = sld [smem:[#allocation2]]
    %s26 = sld [smem:[#allocation2 + $0x1]]
    %s27 = sld [smem:[#allocation2 + $0x2]]
    %s28 = sld [smem:[#allocation2 + $0x3]]
    %s29 = sld [smem:[#allocation2 + $0x4]]
    %s30 = sld [smem:[#allocation2 + $0x5]]
    %s31 = sld [smem:[#allocation2 + $0x6]]
    %s32 = sld [smem:[#allocation2 + $0x7]]
    %s33 = sld [smem:[#allocation2 + $0x8]]
    %s34 = sld [smem:[#allocation2 + $0x9]]
    %v35 = vstv %s25
    %v36 = vadd.f32 %v24, %v35
    %v37 = vstv %s31
    %v38 = vmul.f32 %v36, %v37
    %v39 = vstv %s26
    %v40 = vadd.f32 %v24, %v39
    %v41 = vstv %s32
    %v42 = vmul.f32 %v40, %v41
    %v43 = vand.u32 2147483647, %v38
    %v44 = vsub.f32 0.0, %v43
    %v45 = vand.u32 2147483647, %v42
    %v46 = vsub.f32 0.0, %v45
    %v47 = vstv %s33
    %v48 = vmul.f32 %v47, %v24
    %v49 = vstv %s34
    %v50 = vmul.f32 %v49, %v24
    %v52 = vlaneseq
    %v53 = vshrl.u32 %v52, 7
    %v54 = vsub.s32 0, %v53
    %v55 = vrot.slane %v44, %v54
    %v56 = vlaneseq
    %v57 = vshrl.u32 %v56, 7
    %v58 = vsub.s32 4, %v57
    %v59 = vrot.slane %v44, %v58
    %v63 = vlaneseq
    %v64 = vshrl.u32 %v63, 7
    %v65 = vsub.s32 1, %v64
    %v66 = vrot.slane %v46, %v65
    %v67 = vlaneseq
    %v68 = vshrl.u32 %v67, 7
    %v69 = vsub.s32 5, %v68
    %v70 = vrot.slane %v46, %v69
    %v74 = vlaneseq
    %v75 = vshrl.u32 %v74, 7
    %v76 = vsub.s32 2, %v75
    %v77 = vrot.slane %v48, %v76
    %v78 = vlaneseq
    %v79 = vshrl.u32 %v78, 7
    %v80 = vsub.s32 6, %v79
    %v81 = vrot.slane %v48, %v80
    %v85 = vlaneseq
    %v86 = vshrl.u32 %v85, 7
    %v87 = vsub.s32 2, %v86
    %v88 = vrot.slane %v50, %v87
    %v89 = vlaneseq
    %v90 = vshrl.u32 %v89, 7
    %v91 = vsub.s32 6, %v90
    %v92 = vrot.slane %v50, %v91
    %vm95 = vcmask 1040384
    %v96 = vsel %vm95, %v55, %v66
    %v97 = vsel %vm95, %v59, %v70
    %vm98 = vcmask 1041408
    %v99 = vsel %vm98, %v96, %v77
    %v100 = vsel %vm98, %v97, %v81
    %vm101 = vcmask 1042432
    %v102 = vsel %vm101, %v99, %v88
    %v103 = vsel %vm101, %v100, %v92
    %v104 = vmul.f32 %v102, 1.442695
    %v105 = vpow.pop %v104
    %v106 = vmul.f32 %v103, 1.442695
    %v107 = vpow.pop %v106
    %v109 = vlaneseq
    %v110 = vshrl.u32 %v109, 7
    %v111 = vsub.s32 0, %v110
    %v112 = vrot.slane %v38, %v111
    %v113 = vlaneseq
    %v114 = vshrl.u32 %v113, 7
    %v115 = vsub.s32 4, %v114
    %v116 = vrot.slane %v38, %v115
    %v120 = vlaneseq
    %v121 = vshrl.u32 %v120, 7
    %v122 = vsub.s32 1, %v121
    %v123 = vrot.slane %v42, %v122
    %v124 = vlaneseq
    %v125 = vshrl.u32 %v124, 7
    %v126 = vsub.s32 5, %v125
    %v127 = vrot.slane %v42, %v126
    %v130 = vsel %vm95, %v112, %v123
    %v131 = vsel %vm95, %v116, %v127
    %v132 = vmax.f32 %v130, 0.0
    %v133 = vmax.f32 %v131, 0.0
    %v134 = vadd.f32 %v105, 1.0
    %v135 = vadd.f32 %v107, 1.0
    %v136 = vlog2.pop %v134
    %v137 = vmul.f32 %v136, 0.6931472
    %v138 = vlog2.pop %v135
    %v139 = vmul.f32 %v138, 0.6931472
    %v140 = vadd.f32 %v132, %v137
    %v141 = vadd.f32 %v133, %v139
    %v142 = vstv %s27
    %v143 = vmul.f32 %v142, %v140
    %v144 = vmul.f32 %v142, %v141
    %v145 = vstv %s29
    %v146 = vmul.f32 %v145, %v105
    %v147 = vmul.f32 %v145, %v107
    %v150 = vrot.slane %v146, 2
    %v151 = vrot.slane %v147, 2
    %v154 = vadd.f32 %v143, %v150
    %v155 = vadd.f32 %v144, %v151
    %v156 = vstv %s28
    %v157 = vmul.f32 %v156, %v140
    %v158 = vmul.f32 %v156, %v141
    %v159 = vstv %s30
    %v160 = vmul.f32 %v159, %v105
    %v161 = vmul.f32 %v159, %v107
    %v164 = vrot.slane %v160, 2
    %v165 = vrot.slane %v161, 2
    %v168 = vadd.f32 %v157, %v164
    %v169 = vadd.f32 %v158, %v165
    %vm170 = vcmp.gt.f32.partialorder %v24, 1.5
    %v173 = vrot.slane %v168, 1
    %v174 = vrot.slane %v169, 1
    %v177 = vadd.f32 %v154, %v173
    %v178 = vadd.f32 %v155, %v174
    %vm179 = vcmp.gt.f32.partialorder %v24, 0.5
    %v180 = vcombine.low %v168, %v169
    %v181 = vrot.slane %v180, 6
    %v185 = vcombine.low %v154, %v155
    %v186 = vrot.slane %v185, 5
    %v188 = vsel %vm179, %v181, %v186
    %v191 = vcombine.low %v177, %v178
    %v192 = vrot.slane %v191, 5
    %v194 = vsel %vm170, %v192, %v188
    %v197 = vunpack.c.l.s4 1966171168
    %v198 = vunpack.c.0.s8 %v197
    %v199 = vlaneseq
    %v200 = vshrl.u32 %v199, 7
    %v201 = vsub.s32 %v198, %v200
    %v202 = vrot.slane %v194, %v201
    %v203 = vcombine.high %v202, %v202
    %v205 = vunpack.c.l.s4 1966171168
    %v206 = vunpack.c.0.s8 %v205
    %v207 = vlaneseq
    %v208 = vshrl.u32 %v207, 7
    %v209 = vsub.s32 %v206, %v208
    %v210 = vrot.slane %v203, %v209
    %v211 = vcombine.high %v210, %v210
    %v213 = vlaneseq
    %vm214 = vcmp.ge.s32.totalorder %v213, 0
    %vm215 = vcmp.lt.s32.totalorder %v213, 256
    %vm216 = vmand %vm214, %vm215
    %217 = vst.msk [vmem:[%s2] sm:$0x3] %vm216, %v211
    // Predicated region
    $region14: #{dyrep_decoder_forward.1} parent=1 // pred_check
      _
    $region15: #{dyrep_decoder_forward.1} parent=1 // pred_check_branch
      %219 = sbr.rel (0) target = $region17
    $region16: #{dyrep_decoder_forward.1} parent=1 // pred_region
      _
    $region17: #{dyrep_decoder_forward.1} parent=1 // pred_fallthru
      _
    // Predicated region
    $region18: #{dyrep_decoder_forward.1} parent=1 // pred_check
      _
    $region19: #{dyrep_decoder_forward.1} parent=1 // pred_check_branch
      %221 = sbr.rel (0) target = $region21
    $region20: #{dyrep_decoder_forward.1} parent=1 // pred_region
      _
    $region21: #{dyrep_decoder_forward.1} parent=1 // pred_fallthru
      _
    %222 = vsyncpa [#allocation3], 1

</llo_original>
